<compile_context>
chip_gen: v7x
topology: tpu7x:2x2x1
jax: 0.10.0
libtpu: 0.0.40
codegen_flags: <defaults>
</compile_context>

<pallas_src>
import jax
import jax.numpy as jnp
from jax.experimental import pallas as pl
from jax.experimental.pallas import tpu as pltpu

EPS = 1e-6


def _sublayer_connection_kernel(x_ref, w_ref, b_ref, o_ref, normed_ref):
    """One (tile_m, tile_n) output tile of: x + Linear(LayerNorm(x)).

    Grid = (row_tiles, col_tiles). The bf16 normalized row tile is computed
    once per row tile (at j == 0) into `normed_ref` and reused for every W
    column slab. gamma/beta are already folded into W / bias by the wrapper.
    """
    j = pl.program_id(1)
    h = x_ref.shape[-1]          # full hidden width (static)
    tn = o_ref.shape[-1]         # output column-tile width (static)

    @pl.when(j == 0)
    def _():
        x = x_ref[...].astype(jnp.float32)                       # (tm, H)
        # Two independent cross-lane (XLU) reductions instead of the serial
        # mean -> diff -> sum(diff^2) chain.
        s1 = jnp.sum(x, axis=-1, keepdims=True)
        s2 = jnp.sum(x * x, axis=-1, keepdims=True)
        mean = s1 * (1.0 / h)
        # Unbiased variance (matches torch.std default); max(h-1,1) guards H==1.
        var = (s2 - s1 * mean) * (1.0 / max(h - 1, 1))
        std = jnp.sqrt(jnp.maximum(var, 0.0))
        inv = pl.reciprocal(std + EPS, approx=False)             # (tm, 1), cheap
        normed_ref[...] = ((x - mean) * inv).astype(jnp.bfloat16)

    # sublayer: Linear — bf16 operands, f32 accumulation on the MXU.
    sub = jnp.dot(normed_ref[...], w_ref[...],
                  preferred_element_type=jnp.float32)
    sub = sub + b_ref[...]

    # Residual: re-read the needed column slice of x straight from its VMEM
    # input buffer (cheaper than keeping a (tm, H) f32 value live across the
    # matmul). Static full-width path when there is a single column tile.
    if tn == h:
        x_res = x_ref[...]
    else:
        start = pl.multiple_of(j * tn, tn)          # tile_n is a multiple of 128
        x_res = x_ref[:, pl.ds(start, tn)]

    # dropout (eval mode): identity.
    o_ref[...] = (x_res.astype(jnp.float32) + sub).astype(o_ref.dtype)


def _round_up(x, m):
    return ((x + m - 1) // m) * m


def _vmem_capacity_bytes():
    """Per-TensorCore VMEM capacity; conservative fallback = v7x's 64 MiB."""
    try:
        return int(pltpu.get_tpu_info().vmem_capacity_bytes)
    except Exception:
        return 64 << 20


def _choose_tiles(n_rows, hidden, x_bytes, out_bytes, vmem_cap):
    """Pick (tile_m, tile_n) and return them with the estimated VMEM footprint."""
    # ---- column tile for W: only when a resident bf16 W would crowd VMEM ----
    if hidden % 128 == 0 and (2 * hidden * hidden) > vmem_cap // 4:
        tile_n = 512
        while tile_n > 128 and (2 * hidden * tile_n * 2) > vmem_cap // 4:
            tile_n //= 2
        while hidden % tile_n != 0:
            tile_n //= 2
    else:
        tile_n = hidden
    # TODO(synk): H that is large but not a multiple of 128 keeps the full
    # (H, H) W resident; pad H in the wrapper if that case ever matters.

    # ---- row tile: scale with H (kernel is HBM-bound for small/medium H) ----
    if hidden <= 1024:
        tile_m = 1024
    elif hidden <= 2048:
        tile_m = 512
    else:
        tile_m = 256
    tile_m = min(tile_m, _round_up(n_rows, 8))
    tile_m = max(8, (tile_m // 8) * 8)

    def footprint(tm):
        w_bufs = 1 if tile_n == hidden else 2          # resident vs streamed slabs
        return (2 * tm * hidden * x_bytes              # x row tile (double-buffered)
                + 2 * tm * tile_n * out_bytes          # out tile (double-buffered)
                + w_bufs * hidden * tile_n * 2         # W (bf16)
                + tm * hidden * 2                      # normed scratch (bf16)
                + 2 * tile_n * 4)                      # fused bias
    budget = vmem_cap - (6 << 20)
    while footprint(tile_m) > budget and tile_m > 8:
        tile_m = max(8, ((tile_m // 2) // 8) * 8)
    return tile_m, tile_n, footprint(tile_m)


def sublayer_connection(x, gamma, beta, w, w_bias):
    """x: (B, S, H). Returns x + Linear(LayerNorm(x)) (dropout in eval mode)."""
    B, S, H = x.shape
    N = B * S
    x2d = x.reshape(N, H)

    vmem_cap = _vmem_capacity_bytes()
    out_dtype = x.dtype
    tile_m, tile_n, need = _choose_tiles(
        N, H, x.dtype.itemsize, jnp.dtype(out_dtype).itemsize, vmem_cap)

    n_pad = _round_up(N, tile_m)
    if n_pad != N:
        # Zero rows stay finite through the kernel (diff == 0) and are sliced off.
        x2d = jnp.pad(x2d, ((0, n_pad - N), (0, 0)))
    grid = (n_pad // tile_m, H // tile_n)

    # Fold the LayerNorm affine into the linear layer (in f32, before bf16 cast):
    #   gamma*z @ W + beta @ W + bias  ==  z @ (gamma[:,None]*W) + (beta @ W + bias)
    w_f32 = w.astype(jnp.float32)
    w_fused = (gamma.astype(jnp.float32)[:, None] * w_f32).astype(jnp.bfloat16)
    bias_fused = (beta.astype(jnp.float32) @ w_f32
                  + w_bias.astype(jnp.float32)).reshape(1, H)

    def _w_spec():
        if tile_n == H:
            # Resident full-width W: try to single-buffer it (saves one W copy).
            try:
                return pl.BlockSpec((H, H), lambda i, j: (0, 0),
                                    pipeline_mode=pl.Buffered(1))
            except (TypeError, AttributeError):
                return pl.BlockSpec((H, H), lambda i, j: (0, 0))
        # Streamed (H, tile_n) column slabs (double-buffered by default).
        return pl.BlockSpec((H, tile_n), lambda i, j: (0, j))

    # Scoped-VMEM limit: enough for the chosen tiles (+headroom), clamped to the
    # actual per-TensorCore capacity of this generation.
    vmem_limit = int(min(max(need + (4 << 20), 32 << 20), vmem_cap - (2 << 20)))

    out = pl.pallas_call(
        _sublayer_connection_kernel,
        out_shape=jax.ShapeDtypeStruct((n_pad, H), out_dtype),
        grid_spec=pltpu.PrefetchScalarGridSpec(
            num_scalar_prefetch=0,
            grid=grid,
            in_specs=[
                pl.BlockSpec((tile_m, H), lambda i, j: (i, 0)),   # x rows (not re-DMA'd over j)
                _w_spec(),                                        # W (bf16)
                pl.BlockSpec((1, tile_n), lambda i, j: (0, j)),   # fused bias
            ],
            out_specs=pl.BlockSpec((tile_m, tile_n), lambda i, j: (i, j)),
            scratch_shapes=[pltpu.VMEM((tile_m, H), jnp.bfloat16)],  # normed rows
        ),
        compiler_params=pltpu.CompilerParams(
            dimension_semantics=("parallel", "arbitrary"),
            vmem_limit_bytes=vmem_limit,
        ),
    )(x2d, w_fused, bias_fused)

    if n_pad != N:
        out = out[:N]
    return out.reshape(B, S, H)


def _reference(x, gamma, beta, w, w_bias):
    """Pure-JAX f32 reference matching the PyTorch module semantics (eval)."""
    mean = jnp.mean(x, axis=-1, keepdims=True)
    diff = x - mean
    var = jnp.sum(diff * diff, axis=-1, keepdims=True) / (x.shape[-1] - 1)
    std = jnp.sqrt(var)
    normed = gamma * diff / (std + EPS) + beta
    sub = normed @ w + w_bias
    return x + sub


if __name__ == "__main__":
    B, S, H = 2, 8, 32
    key = jax.random.PRNGKey(0)
    kx, kw, kb, kg, kbe = jax.random.split(key, 5)

    x = jax.random.normal(kx, (B, S, H), dtype=jnp.float32)

    # Non-trivial LayerNorm affine so the gamma/beta fold is exercised.
    gamma = 1.0 + 0.1 * jax.random.normal(kg, (H,), dtype=jnp.float32)
    beta = 0.1 * jax.random.normal(kbe, (H,), dtype=jnp.float32)
    w = jax.random.normal(kw, (H, H), dtype=jnp.float32) * (1.0 / jnp.sqrt(H))
    w_bias = jax.random.normal(kb, (H,), dtype=jnp.float32) * 0.01

    out = sublayer_connection(x, gamma, beta, w, w_bias)
    out = jax.block_until_ready(out)

    ref = _reference(x, gamma, beta, w, w_bias)
    assert out.shape == (B, S, H)
    # Remaining error vs. the f32 reference comes from the bf16 MXU operands
    # (the norm reciprocal is now exact).
    max_err = float(jnp.max(jnp.abs(out - ref)))
    assert jnp.allclose(out, ref, atol=3e-2, rtol=3e-2), max_err

    print("KERNEL_OK")
</pallas_src>

<mosaic_0001>
module attributes {stable_mosaic.version = 11 : i64} {
  func.func @_sublayer_connection_kernel(%arg0: i32, %arg1: i32, %arg2: memref<16x32xf32, #tpu.memory_space<vmem>>, %arg3: memref<32x32xbf16, #tpu.memory_space<vmem>>, %arg4: memref<1x32xf32, #tpu.memory_space<vmem>>, %arg5: memref<16x32xf32, #tpu.memory_space<vmem>>, %arg6: memref<16x32xbf16, #tpu.memory_space<vmem>>) attributes {dimension_semantics = [#tpu.dimension_semantics<parallel>, #tpu.dimension_semantics<arbitrary>], iteration_bounds = array<i64: 1, 1>, scalar_prefetch = 0 : i64, scratch_operands = 1 : i64, tpu.core_type = #tpu.core_type<tc>, window_params = [{transform_indices = @transform_0, window_bounds = array<i64: 16, 32>}, {pipeline_mode = #tpu.pipeline_mode<synchronous>, transform_indices = @transform_1, window_bounds = array<i64: 32, 32>}, {transform_indices = @transform_2, window_bounds = array<i64: 1, 32>}, {transform_indices = @transform_3, window_bounds = array<i64: 16, 32>}]} {
    %c0_i32 = arith.constant 0 : i32
    %0 = arith.cmpi eq, %arg1, %c0_i32 : i32
    %1 = arith.extui %0 : i1 to i32
    %c0_i32_0 = arith.constant 0 : i32
    %2 = arith.cmpi ne, %1, %c0_i32_0 : i32
    scf.if %2 {
      %c0_10 = arith.constant 0 : index
      %c0_11 = arith.constant 0 : index
      %12 = vector.load %arg2[%c0_10, %c0_11] : memref<16x32xf32, #tpu.memory_space<vmem>>, vector<16x32xf32>
      %cst_12 = arith.constant dense<0.000000e+00> : vector<16xf32>
      %13 = vector.multi_reduction <add>, %12, %cst_12 [1] : vector<16x32xf32> to vector<16xf32>
      %14 = vector.shape_cast %13 : vector<16xf32> to vector<16x1xf32>
      %15 = arith.mulf %12, %12 : vector<16x32xf32>
      %cst_13 = arith.constant dense<0.000000e+00> : vector<16xf32>
      %16 = vector.multi_reduction <add>, %15, %cst_13 [1] : vector<16x32xf32> to vector<16xf32>
      %17 = vector.shape_cast %16 : vector<16xf32> to vector<16x1xf32>
      %cst_14 = arith.constant 3.125000e-02 : f32
      %18 = vector.broadcast %cst_14 : f32 to vector<16x1xf32>
      %19 = arith.mulf %14, %18 : vector<16x1xf32>
      %20 = arith.mulf %14, %19 : vector<16x1xf32>
      %21 = arith.subf %17, %20 : vector<16x1xf32>
      %cst_15 = arith.constant 0.0322580636 : f32
      %22 = vector.broadcast %cst_15 : f32 to vector<16x1xf32>
      %23 = arith.mulf %21, %22 : vector<16x1xf32>
      %cst_16 = arith.constant 0.000000e+00 : f32
      %24 = vector.broadcast %cst_16 : f32 to vector<16x1xf32>
      %25 = arith.maximumf %23, %24 : vector<16x1xf32>
      %26 = math.sqrt %25 : vector<16x1xf32>
      %cst_17 = arith.constant 9.99999997E-7 : f32
      %27 = vector.broadcast %cst_17 : f32 to vector<16x1xf32>
      %28 = arith.addf %26, %27 : vector<16x1xf32>
      %29 = tpu.reciprocal %28 : vector<16x1xf32> -> vector<16x1xf32>
      %30 = vector.broadcast %19 : vector<16x1xf32> to vector<16x32xf32>
      %31 = arith.subf %12, %30 : vector<16x32xf32>
      %32 = vector.broadcast %29 : vector<16x1xf32> to vector<16x32xf32>
      %33 = arith.mulf %31, %32 : vector<16x32xf32>
      %34 = arith.truncf %33 : vector<16x32xf32> to vector<16x32xbf16>
      %c0_18 = arith.constant 0 : index
      %c0_19 = arith.constant 0 : index
      %35 = vector.load %arg6[%c0_18, %c0_19] : memref<16x32xbf16, #tpu.memory_space<vmem>>, vector<16x32xbf16>
      tpu.vector_store %arg6[%c0_18, %c0_19], %34 {strides = array<i32>} : memref<16x32xbf16, #tpu.memory_space<vmem>>, vector<16x32xbf16>,
    } else {
    }
    %c0 = arith.constant 0 : index
    %c0_1 = arith.constant 0 : index
    %3 = vector.load %arg6[%c0, %c0_1] : memref<16x32xbf16, #tpu.memory_space<vmem>>, vector<16x32xbf16>
    %c0_2 = arith.constant 0 : index
    %c0_3 = arith.constant 0 : index
    %4 = vector.load %arg3[%c0_2, %c0_3] : memref<32x32xbf16, #tpu.memory_space<vmem>>, vector<32x32xbf16>
    %cst = arith.constant dense<0.000000e+00> : vector<16x32xf32>
    %5 = tpu.matmul %3, %4, %cst {dimension_numbers = #tpu.dot_dimension_numbers<[1], [0], [0], [1], [0, 0, 1, 1], [], []>} : vector<16x32xbf16>, vector<32x32xbf16>, vector<16x32xf32> -> vector<16x32xf32>
    %c0_4 = arith.constant 0 : index
    %c0_5 = arith.constant 0 : index
    %6 = vector.load %arg4[%c0_4, %c0_5] : memref<1x32xf32, #tpu.memory_space<vmem>>, vector<1x32xf32>
    %7 = vector.broadcast %6 : vector<1x32xf32> to vector<16x32xf32>
    %8 = arith.addf %5, %7 : vector<16x32xf32>
    %c0_6 = arith.constant 0 : index
    %c0_7 = arith.constant 0 : index
    %9 = vector.load %arg2[%c0_6, %c0_7] : memref<16x32xf32, #tpu.memory_space<vmem>>, vector<16x32xf32>
    %10 = arith.addf %9, %8 : vector<16x32xf32>
    %c0_8 = arith.constant 0 : index
    %c0_9 = arith.constant 0 : index
    %11 = vector.load %arg5[%c0_8, %c0_9] : memref<16x32xf32, #tpu.memory_space<vmem>>, vector<16x32xf32>
    tpu.vector_store %arg5[%c0_8, %c0_9], %10 {strides = array<i32>} : memref<16x32xf32, #tpu.memory_space<vmem>>, vector<16x32xf32>,
    return
  }
  func.func @transform_0(%arg0: i32, %arg1: i32) -> (i32, i32) {
    %c0_i32 = arith.constant 0 : i32
    %c0_i32_0 = arith.constant 0 : i32
    return %arg0, %c0_i32 : i32, i32
  }
  func.func @transform_1(%arg0: i32, %arg1: i32) -> (i32, i32) {
    %c0_i32 = arith.constant 0 : i32
    %c0_i32_0 = arith.constant 0 : i32
    %c0_i32_1 = arith.constant 0 : i32
    return %c0_i32, %c0_i32_0 : i32, i32
  }
  func.func @transform_2(%arg0: i32, %arg1: i32) -> (i32, i32) {
    %c0_i32 = arith.constant 0 : i32
    %c0_i32_0 = arith.constant 0 : i32
    return %c0_i32, %arg1 : i32, i32
  }
  func.func @transform_3(%arg0: i32, %arg1: i32) -> (i32, i32) {
    %c0_i32 = arith.constant 0 : i32
    return %arg0, %arg1 : i32, i32
  }
}

</mosaic_0001>

<llo_original>
// kernel: tpu_custom_call.1
$region0: #{tpu_custom_call.1}
  #allocation0 [shape = 'u32[]', space=smem, size = 0x4, offset = 0x4, fixed_abs, tag = 'smem constant byte address 0x4 - core index']
  #allocation1 [shape = 'u32[144,128]{1,0:T(1,128)}', space=vmem, size = 0x12000, scoped, tag = 'internal scratch']
  #allocation2 [shape = 'bf16[16,32]{1,0:T(16,128)(2,1)}', space=vmem, size = 0x1000, scoped, tag = 'scratch operand']
  %s0 = inlined_call_operand.hbm [shape: f32[16,32], index: 0, kind: input, shape index: {}]
  %s1 = inlined_call_operand.hbm [shape: bf16[32,32], index: 1, kind: input, shape index: {}]
  %s2 = inlined_call_operand.vmem [shape: f32[1,32], index: 2, kind: input, shape index: {}]
  %s3 = inlined_call_operand.hbm [shape: f32[16,32], index: 3, kind: output, shape index: {}]
  %s4 = sld [smem:[#allocation0]]
  $region34: #{tpu_custom_call.1} parent=0
    _
  %s6 = ssub.s32 1, %s4
  %s7 = scalar_select 0, %s6, %s4
  $region1: #{tpu_custom_call.1} parent=0
    #allocation3 [shape = 'u8[8192]{0}', space=vmem, size = 0x2000, scoped, tag = 'input window, operand 0, single buffered']
    #allocation4 [shape = 's32[1]{0}', space=sflag, size = 0x4, scoped, tag = 'scoped memory for tpu_custom_call.1']
    #allocation5 [shape = 's32[1]{0}', space=sflag, size = 0x4, scoped, tag = 'scoped memory for tpu_custom_call.1']
    #allocation6 [shape = 'u8[8192]{0}', space=vmem, size = 0x2000, scoped, tag = 'input window, operand 1, single buffered']
    #allocation7 [shape = 's32[1]{0}', space=sflag, size = 0x4, scoped, tag = 'scoped memory for tpu_custom_call.1']
    #allocation8 [shape = 'u8[8192]{0}', space=vmem, size = 0x2000, scoped, tag = 'output window, operand 0, single buffered']
    %8 = vsyncpa [#allocation4], 0
    %9 = vsyncpa [#allocation7], 0
    %10 = vsyncpa [#allocation5], 0
    // Predicated region
    $region2: #{tpu_custom_call.1} parent=1 // pred_check
      _
    $region3: #{tpu_custom_call.1} parent=1 // pred_check_branch
      %12 = sbr.rel (0) target = $region5
    $region4: #{tpu_custom_call.1} parent=1 // pred_region
      %s14 = ssub.s32 256, 256
      %15 = vsyncadd [#allocation4], %s14
      %s16 = sshll.u32 [#allocation3], 4
      %s17 = int_to_ptr.vmem [resolvable:$true] %s16
      %22 = dma.hbm_to_vmem [thread:$0]  %s0, 256, %s17, [#allocation4], 128, 128, 8
    $region5: #{tpu_custom_call.1} parent=1 // pred_fallthru
      _
    // Predicated region
    $region6: #{tpu_custom_call.1} parent=1 // pred_check
      _
    $region7: #{tpu_custom_call.1} parent=1 // pred_check_branch
      %24 = sbr.rel (0) target = $region9
    $region8: #{tpu_custom_call.1} parent=1 // pred_region
      %s26 = ssub.s32 256, 256
      %27 = vsyncadd [#allocation7], %s26
      %s28 = sshll.u32 [#allocation6], 4
      %s29 = int_to_ptr.vmem [resolvable:$true] %s28
      %34 = dma.hbm_to_vmem [thread:$0]  %s1, 256, %s29, [#allocation7], 64, 64, 4
    $region9: #{tpu_custom_call.1} parent=1 // pred_fallthru
      _
    // Predicated region
    $region10: #{tpu_custom_call.1} parent=1 // pred_check
      _
    $region11: #{tpu_custom_call.1} parent=1 // pred_check_branch
      %36 = sbr.rel (0) target = $region13
    $region12: #{tpu_custom_call.1} parent=1 // pred_region
      _
    $region13: #{tpu_custom_call.1} parent=1 // pred_fallthru
      _
    // Predicated region
    $region14: #{tpu_custom_call.1} parent=1 // pred_check
      _
    $region15: #{tpu_custom_call.1} parent=1 // pred_check_branch
      %38 = sbr.rel (0) target = $region17
    $region16: #{tpu_custom_call.1} parent=1 // pred_region
      %39 = dma.done [#allocation4], 256
    $region17: #{tpu_custom_call.1} parent=1 // pred_fallthru
      _
    // Predicated region
    $region18: #{tpu_custom_call.1} parent=1 // pred_check
      _
    $region19: #{tpu_custom_call.1} parent=1 // pred_check_branch
      %41 = sbr.rel (0) target = $region21
    $region20: #{tpu_custom_call.1} parent=1 // pred_region
      %42 = dma.done [#allocation7], 256
    $region21: #{tpu_custom_call.1} parent=1 // pred_fallthru
      _
    %p44 = scmp.eq.s32.totalorder 0, 0
    // Predicated region
    $region22: #{tpu_custom_call.1} parent=1 // pred_check
      %p45 = pneg %p44
    $region23: #{tpu_custom_call.1} parent=1 // pred_check_branch
      %47 = sbr.rel (%p45) target = $region25
    $region24: #{tpu_custom_call.1} parent=1 // pred_region
      %v48 = vld [vmem:[#allocation3] sm:$0xff]
      %v49 = vld [vmem:[#allocation3 + $0x8] sm:$0xff]
      %vm50 = vcmask 261120
      %v51 = vsel %vm50, %v48, 0.0
      %52 = vadd.xlane.f32.xlu0 %v51
      %v53 = vpop.xlane.xlu0 %52
      %v54 = vsel %vm50, %v49, 0.0
      %55 = vadd.xlane.f32.xlu0 %v54
      %v56 = vpop.xlane.xlu0 %55
      %v57 = vmul.f32 %v48, %v48
      %v58 = vmul.f32 %v49, %v49
      %v59 = vsel %vm50, %v57, 0.0
      %60 = vadd.xlane.f32.xlu0 %v59
      %v61 = vpop.xlane.xlu0 %60
      %v62 = vsel %vm50, %v58, 0.0
      %63 = vadd.xlane.f32.xlu0 %v62
      %v64 = vpop.xlane.xlu0 %63
      %v65 = vmul.f32 %v53, 0.03125
      %v66 = vmul.f32 %v56, 0.03125
      %v67 = vmul.f32 %v53, %v65
      %v68 = vmul.f32 %v56, %v66
      %v69 = vsub.f32 %v61, %v67
      %v70 = vsub.f32 %v64, %v68
      %v71 = vmul.f32 %v69, 0.032258064
      %v72 = vmul.f32 %v70, 0.032258064
      %v73 = vmax.f32 %v71, 0.0
      %v74 = vmax.f32 %v72, 0.0
      %v75 = vrsqrt.pop %v73
      %v76 = vmul.f32 %v73, %v75
      %vm77 = vcmp.eq.f32.partialorder %v73, inf
      %v78 = vsel %vm77, %v73, %v76
      %vm79 = vcmp.eq.f32.partialorder %v73, 0.0
      %v80 = vand.u32 %v73, 2147483648
      %v81 = vsel %vm79, %v80, %v78
      %v82 = vrsqrt.pop %v74
      %v83 = vmul.f32 %v74, %v82
      %vm84 = vcmp.eq.f32.partialorder %v74, inf
      %v85 = vsel %vm84, %v74, %v83
      %vm86 = vcmp.eq.f32.partialorder %v74, 0.0
      %v87 = vand.u32 %v74, 2147483648
      %v88 = vsel %vm86, %v87, %v85
      %v89 = vadd.f32 %v81, 1e-06
      %v90 = vadd.f32 %v88, 1e-06
      %v91 = vrcp.pop %v89
      %v92 = vrcp.pop %v90
      %v93 = vsub.f32 %v48, %v65
      %v94 = vsub.f32 %v49, %v66
      %v95 = vmul.f32 %v93, %v91
      %v96 = vmul.f32 %v94, %v92
      %v97 = vpack.c.bf16 %v96, %v95
      %98 = vst.msk [vmem:[#allocation2] sm:$0xff] %vm50, %v97
    $region25: #{tpu_custom_call.1} parent=1 // pred_fallthru
      _
    %v99 = vld [vmem:[#allocation2] sm:$0xff]
    %v100 = vld [vmem:[#allocation6] sm:$0xf]
    %v101 = vld [vmem:[#allocation6 + $0x4] sm:$0xf]
    %v102 = vld [vmem:[#allocation6 + $0x8] sm:$0xf]
    %v103 = vld [vmem:[#allocation6 + $0xc] sm:$0xf]
    %v104 = vld [vmem:[%s2] sm:$0x1]
    %v106 = vlaneseq
    %v107 = vshrl.u32 %v106, 7
    %v108 = vsub.s32 0, %v107
    %v109 = vrot.slane %v104, %v108
    %v115 = vunpack.c.l.b16 %v100
    %v116 = vunpack.c.l.b16 %v101
    %v117 = vunpack.c.l.b16 %v102
    %v118 = vunpack.c.l.b16 %v103
    %v119 = vpack.c.b16 %v116, %v115
    %v120 = vpack.c.b16 %v118, %v117
    %vm123 = vcmask 261120
    %v125 = vsel %vm123, %v99, 0
    %127 = vmatprep.subr.bf16.mxu0 0
    %128 = vmatpush1.bf16.msra.mxu0 %v119
    %129 = vmatprep.subr.bf16.mxu0 0
    %130 = vmatpush1.bf16.msra.mxu0 %v120
    %131 = vmatprep.subr.bf16.mxu0 0
    %132 = vmatpush1.bf16.msra.mxu0 0
    %133 = vmatprep.subr.bf16.mxu0 0
    %134 = vmatpush1.bf16.msra.mxu0 0
    %135 = vmatprep.subr.bf16.mxu0 0
    %136 = vmatpush1.bf16.msra.mxu0 0
    %137 = vmatprep.subr.bf16.mxu0 0
    %138 = vmatpush1.bf16.msra.mxu0 0
    %139 = vmatprep.subr.bf16.mxu0 0
    %140 = vmatpush1.bf16.msra.mxu0 0
    %141 = vmatprep.subr.bf16.mxu0 0
    %142 = vmatpush1.bf16.msra.mxu0 0
    %143 = vmatprep.subr.bf16.mxu0 0
    %144 = vmatpush1.bf16.msra.mxu0 0
    %145 = vmatprep.subr.bf16.mxu0 0
    %146 = vmatpush1.bf16.msra.mxu0 0
    %147 = vmatprep.subr.bf16.mxu0 0
    %148 = vmatpush1.bf16.msra.mxu0 0
    %149 = vmatprep.subr.bf16.mxu0 0
    %150 = vmatpush1.bf16.msra.mxu0 0
    %151 = vmatprep.subr.bf16.mxu0 0
    %152 = vmatpush1.bf16.msra.mxu0 0
    %153 = vmatprep.subr.bf16.mxu0 0
    %154 = vmatpush1.bf16.msra.mxu0 0
    %155 = vmatprep.subr.bf16.mxu0 0
    %156 = vmatpush1.bf16.msra.mxu0 0
    %157 = vmatprep.subr.bf16.mxu0 0
    %158 = vmatpush1.bf16.msra.mxu0 0
    %159 = vmatprep.mubr.bf16.mxu0 0
    %160 = vmatmul.mubr.bf16.gmra.mrb[0].mxu0 %v125
    %v161 = vpop.f32.mrb[0].mxu0
    %v162 = vadd.f32 %v109, %v161
    %v163 = vpop.f32.mrb[0].mxu0
    %v164 = vpop.f32.mrb[0].mxu0
    %v165 = vadd.f32 %v109, %v164
    %v166 = vpop.f32.mrb[0].mxu0
    %167 = vdwg.mxu0
    %v168 = vld [vmem:[#allocation3] sm:$0xff]
    %v169 = vld [vmem:[#allocation3 + $0x8] sm:$0xff]
    %v170 = vadd.f32 %v168, %v162
    %v171 = vadd.f32 %v169, %v165
    %172 = vst.msk [vmem:[#allocation8] sm:$0xff] %vm123, %v170
    %173 = vst.msk [vmem:[#allocation8 + $0x8] sm:$0xff] %vm123, %v171
    // Predicated region
    $region26: #{tpu_custom_call.1} parent=1 // pred_check
      _
    $region27: #{tpu_custom_call.1} parent=1 // pred_check_branch
      %175 = sbr.rel (0) target = $region29
    $region28: #{tpu_custom_call.1} parent=1 // pred_region
      %s177 = ssub.s32 256, 256
      %178 = vsyncadd [#allocation5], %s177
      %s179 = sshll.u32 [#allocation8], 4
      %s180 = int_to_ptr.vmem [resolvable:$true] %s179
      %185 = dma.vmem_to_hbm [thread:$0]  %s180, 256, %s3, [#allocation5], 128, 128, 8
    $region29: #{tpu_custom_call.1} parent=1 // pred_fallthru
      _
    // Predicated region
    $region30: #{tpu_custom_call.1} parent=1 // pred_check
      _
    $region31: #{tpu_custom_call.1} parent=1 // pred_check_branch
      %187 = sbr.rel (0) target = $region33
    $region32: #{tpu_custom_call.1} parent=1 // pred_region
      %188 = dma.done [#allocation5], 256
    $region33: #{tpu_custom_call.1} parent=1 // pred_fallthru
      _
    %189 = vsyncpa [#allocation4], 1
    %190 = vsyncpa [#allocation7], 1
    %191 = vsyncpa [#allocation5], 1

</llo_original>
